<compile_context>
chip_gen: v6e
topology: v6e:2x2x1
jax: 0.10.0
libtpu: 0.0.40
codegen_flags: <defaults>
</compile_context>

<pallas_src>
import functools

import jax
import jax.numpy as jnp
from jax import lax
from jax.experimental import pallas as pl
from jax.experimental.pallas import tpu as pltpu

_KPAD = 16       # bf16 sublane packing: pad conv K (input-channel) dim to 16


def _round_up(x, m):
    return (x + m - 1) // m * m


def _halo(W):
    # Lane-aligned halo wide enough for the worst tap offset d = -(W+1).
    # (Fixes the old _HALO=128 assumption, which broke for W >= 128.)
    return _round_up(W + 1, 128)


def _strip_width(H, W):
    return _round_up(_halo(W) + H * W + W + 1, 128)


# ---------------------------------------------------------------------------
# In-kernel building blocks (values are in (C, H*W) layout: spatial on lanes)
# ---------------------------------------------------------------------------

def _col_masks(H, W):
    """(1, HW) f32 column-validity masks for dw=-1 / dw=+1 taps (in-kernel,
    from a lane iota: no (9, HW) mask input DMA)."""
    HW = H * W
    col = lax.broadcasted_iota(jnp.int32, (1, HW), 1) % W
    mask_l = (col != 0).astype(jnp.float32)        # reading column w-1 invalid at w==0
    mask_r = (col != W - 1).astype(jnp.float32)    # reading column w+1 invalid at w==W-1
    return mask_l, mask_r


def _gn_relu(x, gamma, beta, num_groups, eps=1e-5):
    """GroupNorm (PyTorch: biased var, eps inside rsqrt) + ReLU.

    Single pass over x: per-channel s1/s2 lane reductions, then per-group
    aggregation via a tiny constant (C,C) group-membership matmul.  Avoids the
    old per-group slicing (gc not multiple of 8 crossed sublane tiles) and the
    G-long iota/where scatter loop.  Variance clamped >= 0 (cancellation).
    """
    C, HW = x.shape
    gc = C // num_groups
    inv_count = 1.0 / float(gc * HW)
    s1 = jnp.sum(x, axis=1, keepdims=True)          # (C, 1)
    s2 = jnp.sum(x * x, axis=1, keepdims=True)      # (C, 1)
    row_g = lax.broadcasted_iota(jnp.int32, (C, C), 0) // gc
    col_g = lax.broadcasted_iota(jnp.int32, (C, C), 1) // gc
    memb = jnp.where(row_g == col_g, inv_count, 0.0).astype(jnp.float32)
    mean_c = jnp.dot(memb, s1, preferred_element_type=jnp.float32)   # (C, 1)
    ex2_c = jnp.dot(memb, s2, preferred_element_type=jnp.float32)    # (C, 1)
    var_c = jnp.maximum(ex2_c - mean_c * mean_c, 0.0)
    rstd_c = lax.rsqrt(var_c + eps)
    scale = gamma * rstd_c
    shift = beta - mean_c * scale
    return jnp.maximum(x * scale + shift, 0.0)       # activation = F.relu


def _conv3x3(h, w_ref, bias, hs_ref, mask_l, mask_r, H, W, halo):
    """3x3 'same' conv as 9 accumulating per-tap MXU matmuls (no im2col buffer).

    h      : (Cin, HW) f32 input, spatial flattened on lanes.
    w_ref  : (9, Cout, Cpad) bf16 packed weight ref, tap-major, K padded to 16.
    bias   : (Cout, 1) f32.
    hs_ref : (>=Cpad, strip_width) f32 VMEM staging strip.
    Returns (Cout, HW) f32.
    """
    Cin, HW = h.shape
    Cout, cpad = w_ref.shape[1], w_ref.shape[2]
    band = W + 1
    # Zero ONLY the halo bands the tap windows actually read (protects against
    # stale NaN in VMEM from earlier kernels / earlier convs); the interior is
    # fully overwritten below.  No full-strip zero fill.
    zer = jnp.zeros((cpad, band), jnp.float32)
    hs_ref[0:cpad, halo - band:halo] = zer
    hs_ref[0:cpad, halo + HW:halo + HW + band] = zer
    hs_ref[0:Cin, halo:halo + HW] = h
    if Cin < cpad:   # K-padding rows must be zero (zero weight cols are not enough vs NaN)
        hs_ref[Cin:cpad, halo:halo + HW] = jnp.zeros((cpad - Cin, HW), jnp.float32)

    acc = jnp.zeros((Cout, HW), jnp.float32)
    for kh in range(3):
        for kw in range(3):
            t = kh * 3 + kw
            d = (kh - 1) * W + (kw - 1)       # flat spatial offset of this tap
            win = hs_ref[0:cpad, halo + d:halo + d + HW]
            # Vertical out-of-image taps land in the zero halo: no mask needed.
            # Only the horizontal (column-wrap) taps need masking.
            if kw == 0:
                win = win * mask_l
            elif kw == 2:
                win = win * mask_r
            acc = acc + jnp.dot(w_ref[t], win.astype(jnp.bfloat16),
                                preferred_element_type=jnp.float32)
    return acc + bias


# ---------------------------------------------------------------------------
# Pallas kernels
# ---------------------------------------------------------------------------

def _conv_kernel(x_ref, w_ref, b_ref, o_ref, hs_ref, *, H, W, halo):
    x = x_ref[0].astype(jnp.float32)
    mask_l, mask_r = _col_masks(H, W)
    y = _conv3x3(x, w_ref, b_ref[...], hs_ref, mask_l, mask_r, H, W, halo)
    o_ref[0] = y.astype(o_ref.dtype)


def _gn_conv_kernel(x_ref, g_ref, be_ref, w_ref, b_ref, o_ref, hs_ref,
                    *, H, W, halo, num_groups):
    x = x_ref[0].astype(jnp.float32)
    h = _gn_relu(x, g_ref[...], be_ref[...], num_groups)
    mask_l, mask_r = _col_masks(H, W)
    y = _conv3x3(h, w_ref, b_ref[...], hs_ref, mask_l, mask_r, H, W, halo)
    o_ref[0] = y.astype(o_ref.dtype)


def _resblock_kernel(x_ref, g1_ref, be1_ref, w1_ref, b1_ref,
                     g2_ref, be2_ref, w2_ref, b2_ref, *rest,
                     H, W, halo, num_groups, has_skip):
    """Whole ResidualBlock in one kernel; ONE shared staging strip for both convs."""
    if has_skip:
        ws_ref, bs_ref, o_ref, hs_ref = rest
    else:
        o_ref, hs_ref = rest
    x = x_ref[0].astype(jnp.float32)
    mask_l, mask_r = _col_masks(H, W)
    h = _gn_relu(x, g1_ref[...], be1_ref[...], num_groups)
    h = _conv3x3(h, w1_ref, b1_ref[...], hs_ref, mask_l, mask_r, H, W, halo)
    h = _gn_relu(h, g2_ref[...], be2_ref[...], num_groups)
    # nn.Dropout(p) is identity at inference time.
    h = _conv3x3(h, w2_ref, b2_ref[...], hs_ref, mask_l, mask_r, H, W, halo)
    if has_skip:
        skip = jnp.dot(ws_ref[...], x.astype(jnp.bfloat16),
                       preferred_element_type=jnp.float32) + bs_ref[...]
    else:
        skip = x
    o_ref[0] = (h + skip).astype(o_ref.dtype)


# ---------------------------------------------------------------------------
# pallas_call wrappers (grid over batch; whole feature map per grid step)
# ---------------------------------------------------------------------------

@functools.lru_cache(maxsize=1)
def _vmem_limit_bytes():
    # Per-generation limit from actual VMEM capacity: ~100 MiB on v5e/v6e
    # (128 MiB physical), ~56 MiB on v7x (64 MiB physical).
    try:
        cap = int(getattr(pltpu.get_tpu_info(), "vmem_capacity_bytes",
                          64 * 1024 * 1024))
    except Exception:
        cap = 64 * 1024 * 1024
    return int(min(100 * 1024 * 1024, max(cap - 8 * 1024 * 1024,
                                          32 * 1024 * 1024)))


def _cparams():
    # TODO(synk): for large decoder resolutions on v7x (64 MiB VMEM), re-tile
    # spatially (row tiles with a 1-row halo) and add a second "parallel" grid
    # axis so both TensorCores get work at batch 1; whole-feature-map blocks
    # are fine at the shapes exercised here.
    # TODO(synk): mark grid-invariant weight/bias/GN operands single-buffered
    # (pipeline_mode=pl.Buffered(1)) once verified on the target jax version.
    return pltpu.CompilerParams(dimension_semantics=("parallel",),
                                vmem_limit_bytes=_vmem_limit_bytes())


def conv3x3_call(x, w_packed, bias, H, W):
    N, Cin, HW = x.shape
    _, Cout, cpad = w_packed.shape
    halo = _halo(W)
    kern = functools.partial(_conv_kernel, H=H, W=W, halo=halo)
    return pl.pallas_call(
        kern,
        out_shape=jax.ShapeDtypeStruct((N, Cout, HW), x.dtype),
        grid=(N,),
        in_specs=[
            pl.BlockSpec((1, Cin, HW), lambda n: (n, 0, 0)),
            pl.BlockSpec((9, Cout, cpad), lambda n: (0, 0, 0)),
            pl.BlockSpec((Cout, 1), lambda n: (0, 0)),
        ],
        out_specs=pl.BlockSpec((1, Cout, HW), lambda n: (n, 0, 0)),
        scratch_shapes=[pltpu.VMEM((cpad, _strip_width(H, W)), jnp.float32)],
        compiler_params=_cparams(),
    )(x, w_packed, bias)


def resblock_call(x, blk, H, W, num_groups):
    N, Cin, HW = x.shape
    _, Cout, cpad1 = blk["w1"].shape
    cpad2 = blk["w2"].shape[2]
    has_skip = blk["skip_w"] is not None
    halo = _halo(W)
    inputs = [x, blk["gn1_g"], blk["gn1_b"], blk["w1"], blk["b1"],
              blk["gn2_g"], blk["gn2_b"], blk["w2"], blk["b2"]]
    in_specs = [
        pl.BlockSpec((1, Cin, HW), lambda n: (n, 0, 0)),
        pl.BlockSpec((Cin, 1), lambda n: (0, 0)),
        pl.BlockSpec((Cin, 1), lambda n: (0, 0)),
        pl.BlockSpec((9, Cout, cpad1), lambda n: (0, 0, 0)),
        pl.BlockSpec((Cout, 1), lambda n: (0, 0)),
        pl.BlockSpec((Cout, 1), lambda n: (0, 0)),
        pl.BlockSpec((Cout, 1), lambda n: (0, 0)),
        pl.BlockSpec((9, Cout, cpad2), lambda n: (0, 0, 0)),
        pl.BlockSpec((Cout, 1), lambda n: (0, 0)),
    ]
    if has_skip:
        inputs += [blk["skip_w"], blk["skip_b"]]
        in_specs += [pl.BlockSpec((Cout, Cin), lambda n: (0, 0)),
                     pl.BlockSpec((Cout, 1), lambda n: (0, 0))]
    kern = functools.partial(_resblock_kernel, H=H, W=W, halo=halo,
                             num_groups=num_groups, has_skip=has_skip)
    # One shared staging strip for both convs (scratch is full-lifetime, so
    # sharing halves the conv scratch footprint).
    strip_rows = max(cpad1, cpad2)
    return pl.pallas_call(
        kern,
        out_shape=jax.ShapeDtypeStruct((N, Cout, HW), x.dtype),
        grid=(N,),
        in_specs=in_specs,
        out_specs=pl.BlockSpec((1, Cout, HW), lambda n: (n, 0, 0)),
        scratch_shapes=[pltpu.VMEM((strip_rows, _strip_width(H, W)),
                                   jnp.float32)],
        compiler_params=_cparams(),
    )(*inputs)


def gn_conv_call(x, norm, conv, H, W, num_groups):
    N, C, HW = x.shape
    _, Cout, cpad = conv["w"].shape
    halo = _halo(W)
    kern = functools.partial(_gn_conv_kernel, H=H, W=W, halo=halo,
                             num_groups=num_groups)
    return pl.pallas_call(
        kern,
        out_shape=jax.ShapeDtypeStruct((N, Cout, HW), x.dtype),
        grid=(N,),
        in_specs=[
            pl.BlockSpec((1, C, HW), lambda n: (n, 0, 0)),
            pl.BlockSpec((C, 1), lambda n: (0, 0)),
            pl.BlockSpec((C, 1), lambda n: (0, 0)),
            pl.BlockSpec((9, Cout, cpad), lambda n: (0, 0, 0)),
            pl.BlockSpec((Cout, 1), lambda n: (0, 0)),
        ],
        out_specs=pl.BlockSpec((1, Cout, HW), lambda n: (n, 0, 0)),
        scratch_shapes=[pltpu.VMEM((cpad, _strip_width(H, W)), jnp.float32)],
        compiler_params=_cparams(),
    )(x, norm["g"], norm["b"], conv["w"], conv["b"])


# ---------------------------------------------------------------------------
# Module forward (kernels do the work; only upsample/reshape glue is plain JAX)
# ---------------------------------------------------------------------------

def memory_decoder_forward(x_nchw, params, initial_pad=0):
    N, Cl, H, W = x_nchw.shape
    G = params["num_groups"]
    x = x_nchw.reshape(N, Cl, H * W)              # NCHW -> (N, C, H*W), free
    # decoder_conv_in: ConvTranspose2d(k3,s1,p1) folded into a 3x3 conv weight.
    x = conv3x3_call(x, params["conv_in"]["w"], params["conv_in"]["b"], H, W)
    # TODO(synk): memory_network is None in this configuration; its forward is
    # an external config-instantiated module and is not implemented here.
    # TODO(synk): on v5e, fuse consecutive same-resolution ResidualBlocks (and
    # the final GN+out_conv) into one pallas_call to cut HBM round trips.
    for blk in params["ups"]:
        if blk["type"] == "res":
            x = resblock_call(x, blk, H, W, G)
        else:
            # Upsample: nearest-2x as a single reshape/broadcast/reshape pass
            # (one XLA op), then the fused conv3x3 kernel.
            # TODO(synk): fuse the nearest-2x gather into the conv kernel's
            # staging-strip build to drop this extra HBM pass entirely.
            C = x.shape[1]
            x = x.reshape(N, C, H, 1, W, 1)
            x = jnp.broadcast_to(x, (N, C, H, 2, W, 2))
            H, W = 2 * H, 2 * W
            x = x.reshape(N, C, H * W)
            x = conv3x3_call(x, blk["w"], blk["b"], H, W)
    # out_norm -> activation -> out_conv, fused in one kernel.
    x = gn_conv_call(x, params["out_norm"], params["out_conv"], H, W, G)
    x = x.reshape(N, x.shape[1], H, W)            # back to NCHW
    if initial_pad != 0:
        ip = initial_pad
        x = x[:, :, ip:-ip, ip:-ip]
    return x


# ---------------------------------------------------------------------------
# Deterministic parameter construction (shapes follow the module __init__)
# ---------------------------------------------------------------------------

def _pack_conv3x3(w, b):
    """PyTorch conv weight (Cout,Cin,3,3) -> (9, Cout, Cpad) bf16, tap-major,
    Cin zero-padded to a multiple of 16 (bf16 sublane packing)."""
    cout, cin = w.shape[0], w.shape[1]
    cpad = _round_up(cin, _KPAD)
    wt = jnp.transpose(w, (2, 3, 0, 1)).reshape(9, cout, cin)
    wt = jnp.pad(wt, ((0, 0), (0, 0), (0, cpad - cin)))
    return wt.astype(jnp.bfloat16), b.reshape(cout, 1).astype(jnp.float32)


def init_params(key, img_channels, base_channels, latent_channels,
                channel_mults, num_res_blocks, num_groups):
    keys = iter(jax.random.split(key, 256))

    def conv3(cin, cout):
        w = jax.random.normal(next(keys), (cout, cin, 3, 3), jnp.float32) * 0.05
        b = jax.random.normal(next(keys), (cout,), jnp.float32) * 0.05
        return _pack_conv3x3(w, b)

    def conv1(cin, cout):
        w = jax.random.normal(next(keys), (cout, cin), jnp.float32) * 0.05
        b = jax.random.normal(next(keys), (cout,), jnp.float32) * 0.05
        return w.astype(jnp.bfloat16), b.reshape(cout, 1)

    def gn(c):   # PyTorch GroupNorm default init
        return jnp.ones((c, 1), jnp.float32), jnp.zeros((c, 1), jnp.float32)

    params = {"num_groups": num_groups}
    now = base_channels * channel_mults[-1]

    # decoder_conv_in: ConvTranspose2d weight (Cin_latent, Cout, 3, 3)
    wt = jax.random.normal(next(keys), (latent_channels, now, 3, 3),
                           jnp.float32) * 0.05
    bt = jax.random.normal(next(keys), (now,), jnp.float32) * 0.05
    w_eq = jnp.transpose(jnp.flip(jnp.flip(wt, axis=2), axis=3), (1, 0, 2, 3))
    wm, bm = _pack_conv3x3(w_eq, bt)
    params["conv_in"] = {"w": wm, "b": bm}

    ups = []
    for i, mult in reversed(list(enumerate(channel_mults))):
        out_c = base_channels * mult
        for _ in range(num_res_blocks + 1):
            g1, be1 = gn(now)
            g2, be2 = gn(out_c)
            w1, b1 = conv3(now, out_c)
            w2, b2 = conv3(out_c, out_c)
            blk = {"type": "res",
                   "gn1_g": g1, "gn1_b": be1, "gn2_g": g2, "gn2_b": be2,
                   "w1": w1, "b1": b1, "w2": w2, "b2": b2}
            if now != out_c:
                sw, sb = conv1(now, out_c)
                blk["skip_w"], blk["skip_b"] = sw, sb
            else:
                blk["skip_w"], blk["skip_b"] = None, None
            ups.append(blk)
            now = out_c
        if i != 0:
            wu, bu = conv3(now, now)
            ups.append({"type": "up", "w": wu, "b": bu})
    params["ups"] = ups

    g, be = gn(base_channels)
    params["out_norm"] = {"g": g, "b": be}
    wo, bo = conv3(base_channels, img_channels)
    params["out_conv"] = {"w": wo, "b": bo}
    return params


# ---------------------------------------------------------------------------
if __name__ == "__main__":
    # Small configuration consistent with the module's __init__:
    img_channels = 3
    base_channels = 8
    latent_channels = 4
    channel_mults = (1, 2)
    num_res_blocks = 1
    num_groups = 4

    key = jax.random.PRNGKey(0)
    k_param, k_in = jax.random.split(key)
    params = init_params(k_param, img_channels, base_channels, latent_channels,
                         channel_mults, num_res_blocks, num_groups)

    # Latent input, PyTorch NCHW: (batch=2, latent_channels=4, 8, 8)
    x = jax.random.normal(k_in, (2, latent_channels, 8, 8), jnp.float32)

    out = memory_decoder_forward(x, params)
    out = jax.block_until_ready(out)
    assert out.shape == (2, img_channels, 16, 16), out.shape
    assert bool(jnp.all(jnp.isfinite(out)))
    print("KERNEL_OK")
</pallas_src>

<mosaic_0001>
module attributes {stable_mosaic.version = 11 : i64} {
  func.func @_conv_kernel(%arg0: i32, %arg1: memref<1x4x64xf32, #tpu.memory_space<vmem>>, %arg2: memref<9x16x16xbf16, #tpu.memory_space<vmem>>, %arg3: memref<16x1xf32, #tpu.memory_space<vmem>>, %arg4: memref<1x16x64xf32, #tpu.memory_space<vmem>>, %arg5: memref<16x256xf32, #tpu.memory_space<vmem>>) attributes {dimension_semantics = [#tpu.dimension_semantics<parallel>], iteration_bounds = array<i64: 2>, scalar_prefetch = 0 : i64, scratch_operands = 1 : i64, tpu.core_type = #tpu.core_type<tc>, window_params = [{transform_indices = @transform_0, window_bounds = array<i64: 1, 4, 64>}, {pipeline_mode = #tpu.pipeline_mode<synchronous>, transform_indices = @transform_1, window_bounds = array<i64: 9, 16, 16>}, {pipeline_mode = #tpu.pipeline_mode<synchronous>, transform_indices = @transform_2, window_bounds = array<i64: 16, 1>}, {transform_indices = @transform_3, window_bounds = array<i64: 1, 16, 64>}]} {
    %c0 = arith.constant 0 : index
    %c0_0 = arith.constant 0 : index
    %c0_1 = arith.constant 0 : index
    %0 = vector.load %arg1[%c0, %c0_0, %c0_1] : memref<1x4x64xf32, #tpu.memory_space<vmem>>, vector<1x4x64xf32>
    %1 = vector.shape_cast %0 : vector<1x4x64xf32> to vector<4x64xf32>
    %2 = tpu.iota {dimensions = array<i32: 1>} : vector<1x64xi32>
    %c8_i32 = arith.constant 8 : i32
    %c0_i32 = arith.constant 0 : i32
    %3 = arith.cmpi eq, %c8_i32, %c0_i32 : i32
    %c1_i32 = arith.constant 1 : i32
    %4 = arith.select %3, %c1_i32, %c8_i32 : i32
    %5 = vector.broadcast %4 : i32 to vector<1x64xi32>
    %6 = arith.remsi %2, %5 : vector<1x64xi32>
    %c0_i32_2 = arith.constant 0 : i32
    %7 = vector.broadcast %c0_i32_2 : i32 to vector<1x64xi32>
    %8 = arith.cmpi ne, %6, %7 : vector<1x64xi32>
    %c0_i32_3 = arith.constant 0 : i32
    %9 = vector.broadcast %c0_i32_3 : i32 to vector<1x64xi32>
    %10 = arith.cmpi slt, %6, %9 : vector<1x64xi32>
    %c0_i32_4 = arith.constant 0 : i32
    %11 = arith.cmpi slt, %4, %c0_i32_4 : i32
    %12 = vector.broadcast %11 : i1 to vector<1x64xi1>
    %13 = vector.broadcast %12 : vector<1x64xi1> to vector<1x64xi1>
    %14 = arith.xori %10, %13 : vector<1x64xi1>
    %15 = arith.andi %14, %8 : vector<1x64xi1>
    %16 = vector.broadcast %4 : i32 to vector<1x64xi32>
    %17 = arith.addi %6, %16 : vector<1x64xi32>
    %18 = arith.select %15, %17, %6 : vector<1x64xi1>, vector<1x64xi32>
    %c0_i32_5 = arith.constant 0 : i32
    %19 = vector.broadcast %c0_i32_5 : i32 to vector<1x64xi32>
    %20 = arith.cmpi ne, %18, %19 : vector<1x64xi32>
    %21 = arith.extui %20 : vector<1x64xi1> to vector<1x64xi32>
    %22 = arith.sitofp %21 : vector<1x64xi32> to vector<1x64xf32>
    %c7_i32 = arith.constant 7 : i32
    %23 = vector.broadcast %c7_i32 : i32 to vector<1x64xi32>
    %24 = arith.cmpi ne, %18, %23 : vector<1x64xi32>
    %25 = arith.extui %24 : vector<1x64xi1> to vector<1x64xi32>
    %26 = arith.sitofp %25 : vector<1x64xi32> to vector<1x64xf32>
    %c0_6 = arith.constant 0 : index
    %c0_7 = arith.constant 0 : index
    %27 = vector.load %arg3[%c0_6, %c0_7] : memref<16x1xf32, #tpu.memory_space<vmem>>, vector<16x1xf32>
    %cst = arith.constant 0.000000e+00 : f32
    %28 = vector.broadcast %cst : f32 to vector<16x9xf32>
    %c0_8 = arith.constant 0 : index
    %c119 = arith.constant 119 : index
    %29 = vector.load %arg5[%c0_8, %c119] : memref<16x256xf32, #tpu.memory_space<vmem>>, vector<16x9xf32>
    tpu.vector_store %arg5[%c0_8, %c119], %28 {strides = array<i32>} : memref<16x256xf32, #tpu.memory_space<vmem>>, vector<16x9xf32>,
    %c0_9 = arith.constant 0 : index
    %c192 = arith.constant 192 : index
    %30 = vector.load %arg5[%c0_9, %c192] : memref<16x256xf32, #tpu.memory_space<vmem>>, vector<16x9xf32>
    tpu.vector_store %arg5[%c0_9, %c192], %28 {strides = array<i32>} : memref<16x256xf32, #tpu.memory_space<vmem>>, vector<16x9xf32>,
    %c0_10 = arith.constant 0 : index
    %c128 = arith.constant 128 : index
    %31 = vector.load %arg5[%c0_10, %c128] : memref<16x256xf32, #tpu.memory_space<vmem>>, vector<4x64xf32>
    tpu.vector_store %arg5[%c0_10, %c128], %1 {strides = array<i32>} : memref<16x256xf32, #tpu.memory_space<vmem>>, vector<4x64xf32>,
    %cst_11 = arith.constant 0.000000e+00 : f32
    %32 = vector.broadcast %cst_11 : f32 to vector<12x64xf32>
    %c4 = arith.constant 4 : index
    %c128_12 = arith.constant 128 : index
    %33 = vector.load %arg5[%c4, %c128_12] : memref<16x256xf32, #tpu.memory_space<vmem>>, vector<12x64xf32>
    tpu.vector_store %arg5[%c4, %c128_12], %32 {strides = array<i32>} : memref<16x256xf32, #tpu.memory_space<vmem>>, vector<12x64xf32>,
    %cst_13 = arith.constant 0.000000e+00 : f32
    %34 = vector.broadcast %cst_13 : f32 to vector<16x64xf32>
    %c0_14 = arith.constant 0 : index
    %c119_15 = arith.constant 119 : index
    %35 = vector.load %arg5[%c0_14, %c119_15] : memref<16x256xf32, #tpu.memory_space<vmem>>, vector<16x64xf32>
    %36 = vector.broadcast %22 : vector<1x64xf32> to vector<16x64xf32>
    %37 = arith.mulf %35, %36 : vector<16x64xf32>
    %c0_16 = arith.constant 0 : index
    %c0_17 = arith.constant 0 : index
    %c0_18 = arith.constant 0 : index
    %38 = vector.load %arg2[%c0_16, %c0_17, %c0_18] : memref<9x16x16xbf16, #tpu.memory_space<vmem>>, vector<1x16x16xbf16>
    %39 = vector.shape_cast %38 : vector<1x16x16xbf16> to vector<16x16xbf16>
    %40 = arith.truncf %37 : vector<16x64xf32> to vector<16x64xbf16>
    %cst_19 = arith.constant dense<0.000000e+00> : vector<16x64xf32>
    %41 = tpu.matmul %39, %40, %cst_19 {dimension_numbers = #tpu.dot_dimension_numbers<[1], [0], [0], [1], [0, 0, 1, 1], [], []>} : vector<16x16xbf16>, vector<16x64xbf16>, vector<16x64xf32> -> vector<16x64xf32>
    %42 = arith.addf %34, %41 : vector<16x64xf32>
    %c0_20 = arith.constant 0 : index
    %c120 = arith.constant 120 : index
    %43 = vector.load %arg5[%c0_20, %c120] : memref<16x256xf32, #tpu.memory_space<vmem>>, vector<16x64xf32>
    %c1 = arith.constant 1 : index
    %c0_21 = arith.constant 0 : index
    %c0_22 = arith.constant 0 : index
    %44 = vector.load %arg2[%c1, %c0_21, %c0_22] : memref<9x16x16xbf16, #tpu.memory_space<vmem>>, vector<1x16x16xbf16>
    %45 = vector.shape_cast %44 : vector<1x16x16xbf16> to vector<16x16xbf16>
    %46 = arith.truncf %43 : vector<16x64xf32> to vector<16x64xbf16>
    %cst_23 = arith.constant dense<0.000000e+00> : vector<16x64xf32>
    %47 = tpu.matmul %45, %46, %cst_23 {dimension_numbers = #tpu.dot_dimension_numbers<[1], [0], [0], [1], [0, 0, 1, 1], [], []>} : vector<16x16xbf16>, vector<16x64xbf16>, vector<16x64xf32> -> vector<16x64xf32>
    %48 = arith.addf %42, %47 : vector<16x64xf32>
    %c0_24 = arith.constant 0 : index
    %c121 = arith.constant 121 : index
    %49 = vector.load %arg5[%c0_24, %c121] : memref<16x256xf32, #tpu.memory_space<vmem>>, vector<16x64xf32>
    %50 = vector.broadcast %26 : vector<1x64xf32> to vector<16x64xf32>
    %51 = arith.mulf %49, %50 : vector<16x64xf32>
    %c2 = arith.constant 2 : index
    %c0_25 = arith.constant 0 : index
    %c0_26 = arith.constant 0 : index
    %52 = vector.load %arg2[%c2, %c0_25, %c0_26] : memref<9x16x16xbf16, #tpu.memory_space<vmem>>, vector<1x16x16xbf16>
    %53 = vector.shape_cast %52 : vector<1x16x16xbf16> to vector<16x16xbf16>
    %54 = arith.truncf %51 : vector<16x64xf32> to vector<16x64xbf16>
    %cst_27 = arith.constant dense<0.000000e+00> : vector<16x64xf32>
    %55 = tpu.matmul %53, %54, %cst_27 {dimension_numbers = #tpu.dot_dimension_numbers<[1], [0], [0], [1], [0, 0, 1, 1], [], []>} : vector<16x16xbf16>, vector<16x64xbf16>, vector<16x64xf32> -> vector<16x64xf32>
    %56 = arith.addf %48, %55 : vector<16x64xf32>
    %c0_28 = arith.constant 0 : index
    %c127 = arith.constant 127 : index
    %57 = vector.load %arg5[%c0_28, %c127] : memref<16x256xf32, #tpu.memory_space<vmem>>, vector<16x64xf32>
    %58 = vector.broadcast %22 : vector<1x64xf32> to vector<16x64xf32>
    %59 = arith.mulf %57, %58 : vector<16x64xf32>
    %c3 = arith.constant 3 : index
    %c0_29 = arith.constant 0 : index
    %c0_30 = arith.constant 0 : index
    %60 = vector.load %arg2[%c3, %c0_29, %c0_30] : memref<9x16x16xbf16, #tpu.memory_space<vmem>>, vector<1x16x16xbf16>
    %61 = vector.shape_cast %60 : vector<1x16x16xbf16> to vector<16x16xbf16>
    %62 = arith.truncf %59 : vector<16x64xf32> to vector<16x64xbf16>
    %cst_31 = arith.constant dense<0.000000e+00> : vector<16x64xf32>
    %63 = tpu.matmul %61, %62, %cst_31 {dimension_numbers = #tpu.dot_dimension_numbers<[1], [0], [0], [1], [0, 0, 1, 1], [], []>} : vector<16x16xbf16>, vector<16x64xbf16>, vector<16x64xf32> -> vector<16x64xf32>
    %64 = arith.addf %56, %63 : vector<16x64xf32>
    %c0_32 = arith.constant 0 : index
    %c128_33 = arith.constant 128 : index
    %65 = vector.load %arg5[%c0_32, %c128_33] : memref<16x256xf32, #tpu.memory_space<vmem>>, vector<16x64xf32>
    %c4_34 = arith.constant 4 : index
    %c0_35 = arith.constant 0 : index
    %c0_36 = arith.constant 0 : index
    %66 = vector.load %arg2[%c4_34, %c0_35, %c0_36] : memref<9x16x16xbf16, #tpu.memory_space<vmem>>, vector<1x16x16xbf16>
    %67 = vector.shape_cast %66 : vector<1x16x16xbf16> to vector<16x16xbf16>
    %68 = arith.truncf %65 : vector<16x64xf32> to vector<16x64xbf16>
    %cst_37 = arith.constant dense<0.000000e+00> : vector<16x64xf32>
    %69 = tpu.matmul %67, %68, %cst_37 {dimension_numbers = #tpu.dot_dimension_numbers<[1], [0], [0], [1], [0, 0, 1, 1], [], []>} : vector<16x16xbf16>, vector<16x64xbf16>, vector<16x64xf32> -> vector<16x64xf32>
    %70 = arith.addf %64, %69 : vector<16x64xf32>
    %c0_38 = arith.constant 0 : index
    %c129 = arith.constant 129 : index
    %71 = vector.load %arg5[%c0_38, %c129] : memref<16x256xf32, #tpu.memory_space<vmem>>, vector<16x64xf32>
    %72 = vector.broadcast %26 : vector<1x64xf32> to vector<16x64xf32>
    %73 = arith.mulf %71, %72 : vector<16x64xf32>
    %c5 = arith.constant 5 : index
    %c0_39 = arith.constant 0 : index
    %c0_40 = arith.constant 0 : index
    %74 = vector.load %arg2[%c5, %c0_39, %c0_40] : memref<9x16x16xbf16, #tpu.memory_space<vmem>>, vector<1x16x16xbf16>
    %75 = vector.shape_cast %74 : vector<1x16x16xbf16> to vector<16x16xbf16>
    %76 = arith.truncf %73 : vector<16x64xf32> to vector<16x64xbf16>
    %cst_41 = arith.constant dense<0.000000e+00> : vector<16x64xf32>
    %77 = tpu.matmul %75, %76, %cst_41 {dimension_numbers = #tpu.dot_dimension_numbers<[1], [0], [0], [1], [0, 0, 1, 1], [], []>} : vector<16x16xbf16>, vector<16x64xbf16>, vector<16x64xf32> -> vector<16x64xf32>
    %78 = arith.addf %70, %77 : vector<16x64xf32>
    %c0_42 = arith.constant 0 : index
    %c135 = arith.constant 135 : index
    %79 = vector.load %arg5[%c0_42, %c135] : memref<16x256xf32, #tpu.memory_space<vmem>>, vector<16x64xf32>
    %80 = vector.broadcast %22 : vector<1x64xf32> to vector<16x64xf32>
    %81 = arith.mulf %79, %80 : vector<16x64xf32>
    %c6 = arith.constant 6 : index
    %c0_43 = arith.constant 0 : index
    %c0_44 = arith.constant 0 : index
    %82 = vector.load %arg2[%c6, %c0_43, %c0_44] : memref<9x16x16xbf16, #tpu.memory_space<vmem>>, vector<1x16x16xbf16>
    %83 = vector.shape_cast %82 : vector<1x16x16xbf16> to vector<16x16xbf16>
    %84 = arith.truncf %81 : vector<16x64xf32> to vector<16x64xbf16>
    %cst_45 = arith.constant dense<0.000000e+00> : vector<16x64xf32>
    %85 = tpu.matmul %83, %84, %cst_45 {dimension_numbers = #tpu.dot_dimension_numbers<[1], [0], [0], [1], [0, 0, 1, 1], [], []>} : vector<16x16xbf16>, vector<16x64xbf16>, vector<16x64xf32> -> vector<16x64xf32>
    %86 = arith.addf %78, %85 : vector<16x64xf32>
    %c0_46 = arith.constant 0 : index
    %c136 = arith.constant 136 : index
    %87 = vector.load %arg5[%c0_46, %c136] : memref<16x256xf32, #tpu.memory_space<vmem>>, vector<16x64xf32>
    %c7 = arith.constant 7 : index
    %c0_47 = arith.constant 0 : index
    %c0_48 = arith.constant 0 : index
    %88 = vector.load %arg2[%c7, %c0_47, %c0_48] : memref<9x16x16xbf16, #tpu.memory_space<vmem>>, vector<1x16x16xbf16>
    %89 = vector.shape_cast %88 : vector<1x16x16xbf16> to vector<16x16xbf16>
    %90 = arith.truncf %87 : vector<16x64xf32> to vector<16x64xbf16>
    %cst_49 = arith.constant dense<0.000000e+00> : vector<16x64xf32>
    %91 = tpu.matmul %89, %90, %cst_49 {dimension_numbers = #tpu.dot_dimension_numbers<[1], [0], [0], [1], [0, 0, 1, 1], [], []>} : vector<16x16xbf16>, vector<16x64xbf16>, vector<16x64xf32> -> vector<16x64xf32>
    %92 = arith.addf %86, %91 : vector<16x64xf32>
    %c0_50 = arith.constant 0 : index
    %c137 = arith.constant 137 : index
    %93 = vector.load %arg5[%c0_50, %c137] : memref<16x256xf32, #tpu.memory_space<vmem>>, vector<16x64xf32>
    %94 = vector.broadcast %26 : vector<1x64xf32> to vector<16x64xf32>
    %95 = arith.mulf %93, %94 : vector<16x64xf32>
    %c8 = arith.constant 8 : index
    %c0_51 = arith.constant 0 : index
    %c0_52 = arith.constant 0 : index
    %96 = vector.load %arg2[%c8, %c0_51, %c0_52] : memref<9x16x16xbf16, #tpu.memory_space<vmem>>, vector<1x16x16xbf16>
    %97 = vector.shape_cast %96 : vector<1x16x16xbf16> to vector<16x16xbf16>
    %98 = arith.truncf %95 : vector<16x64xf32> to vector<16x64xbf16>
    %cst_53 = arith.constant dense<0.000000e+00> : vector<16x64xf32>
    %99 = tpu.matmul %97, %98, %cst_53 {dimension_numbers = #tpu.dot_dimension_numbers<[1], [0], [0], [1], [0, 0, 1, 1], [], []>} : vector<16x16xbf16>, vector<16x64xbf16>, vector<16x64xf32> -> vector<16x64xf32>
    %100 = arith.addf %92, %99 : vector<16x64xf32>
    %101 = vector.broadcast %27 : vector<16x1xf32> to vector<16x64xf32>
    %102 = arith.addf %100, %101 : vector<16x64xf32>
    %c0_54 = arith.constant 0 : index
    %c0_55 = arith.constant 0 : index
    %c0_56 = arith.constant 0 : index
    %103 = vector.load %arg4[%c0_54, %c0_55, %c0_56] : memref<1x16x64xf32, #tpu.memory_space<vmem>>, vector<1x16x64xf32>
    %104 = vector.shape_cast %103 : vector<1x16x64xf32> to vector<16x64xf32>
    %105 = vector.shape_cast %102 : vector<16x64xf32> to vector<1x16x64xf32>
    tpu.vector_store %arg4[%c0_54, %c0_55, %c0_56], %105 {strides = array<i32>} : memref<1x16x64xf32, #tpu.memory_space<vmem>>, vector<1x16x64xf32>,
    return
  }
  func.func @transform_0(%arg0: i32) -> (i32, i32, i32) {
    %c0_i32 = arith.constant 0 : i32
    %c0_i32_0 = arith.constant 0 : i32
    %c0_i32_1 = arith.constant 0 : i32
    return %arg0, %c0_i32, %c0_i32_0 : i32, i32, i32
  }
  func.func @transform_1(%arg0: i32) -> (i32, i32, i32) {
    %c0_i32 = arith.constant 0 : i32
    %c0_i32_0 = arith.constant 0 : i32
    %c0_i32_1 = arith.constant 0 : i32
    %c0_i32_2 = arith.constant 0 : i32
    return %c0_i32, %c0_i32_0, %c0_i32_1 : i32, i32, i32
  }
  func.func @transform_2(%arg0: i32) -> (i32, i32) {
    %c0_i32 = arith.constant 0 : i32
    %c0_i32_0 = arith.constant 0 : i32
    %c0_i32_1 = arith.constant 0 : i32
    return %c0_i32, %c0_i32_0 : i32, i32
  }
  func.func @transform_3(%arg0: i32) -> (i32, i32, i32) {
    %c0_i32 = arith.constant 0 : i32
    %c0_i32_0 = arith.constant 0 : i32
    %c0_i32_1 = arith.constant 0 : i32
    return %arg0, %c0_i32, %c0_i32_0 : i32, i32, i32
  }
}

</mosaic_0001>

<llo_original>
// kernel: tpu_custom_call.1
$region0: #{tpu_custom_call.1}
  #allocation0 [shape = 'u32[]', space=smem, size = 0x4, offset = 0x4, fixed_abs, tag = 'smem constant byte address 0x4 - core index']
  #allocation1 [shape = 'u32[144,128]{1,0:T(1,128)}', space=vmem, size = 0x12000, scoped, tag = 'internal scratch']
  #allocation2 [shape = 'f32[16,256]{1,0:T(8,128)}', space=vmem, size = 0x4000, scoped, tag = 'scratch operand']
  %s0 = inlined_call_operand.vmem [shape: f32[2,4,64], index: 0, kind: input, shape index: {}]
  %s1 = inlined_call_operand.hbm [shape: bf16[9,16,16], index: 1, kind: input, shape index: {}]
  %s2 = inlined_call_operand.vmem [shape: f32[16,1], index: 2, kind: input, shape index: {}]
  %s3 = inlined_call_operand.hbm [shape: f32[2,16,64], index: 3, kind: output, shape index: {}]
  %s4 = sld [smem:[#allocation0]]
  $region49: #{tpu_custom_call.1} parent=0
    _
  %s6 = ssub.s32 1, %s4
  %s7 = scalar_select 0, %s6, %s4
  $region1: #{tpu_custom_call.1} parent=0
    #allocation3 [shape = 'u8[36864]{0}', space=vmem, size = 0x9000, scoped, tag = 'input window, operand 1, single buffered']
    #allocation4 [shape = 's32[2]{0}', space=sflag, size = 0x8, scoped, tag = 'scoped memory for tpu_custom_call.1']
    #allocation5 [shape = 's32[2]{0}', space=sflag, size = 0x8, scoped, tag = 'scoped memory for tpu_custom_call.1']
    #allocation6 [shape = 'u8[16384]{0}', space=vmem, size = 0x4000, scoped, tag = 'output window, operand 0']
    %8 = vsyncpa [#allocation4], 0
    %9 = vsyncpa [#allocation5], 0
    %s10 = scalar_lea.sflag [#allocation5], 1
    %11 = vsyncpa %s10, 0
    loop: start=0, step=1, limit=4
    $region2: #{tpu_custom_call.1} parent=1 // loop_pre_header
      _
    $region3: #{tpu_custom_call.1} parent=1 // loop_header
      %s13 = sphi 0, %s17
      %p14 = scmp.ge.s32.totalorder %s13, 4
      %s23 = sphi 0, %s25
      %s26 = sphi 0, %s23
      %s27 = sphi 0, %s26
      %s43 = sphi 0, %s27
      %s47 = sphi 0, %s47
      %s49 = sphi 0, %s47
      %s50 = sphi 0, %s49
      %s64 = sphi 0, %s50
      %s68 = sphi 0, %s68
      %s70 = sphi 0, %s68
      %s71 = sphi 0, %s70
      %s85 = sphi 0, %s71
      %s91 = sphi 0, %s93
      %s94 = sphi 0, %s91
      %s95 = sphi 0, %s94
      %s111 = sphi 0, %s95
    $region4: #{tpu_custom_call.1} parent=1 // loop_header_branch
      %16 = sbr.rel (%p14) target = $region8
    $region5: #{tpu_custom_call.1} parent=1 // loop_body
      %s18 = ssub.s32 %s13, 1
      %s19 = ssub.s32 %s13, 2
      %s20 = sadd.s32 %s13, 1
      %s21 = ssub.s32 %s13, %s20
      %p22 = scmp.eq.s32.totalorder %s21, 0
      %s24 = sadd.s32 %s23, 1
      %s25 = scalar_select %p22, %s23, %s24
      %p28 = pneg %p22
      %p29 = scmp.eq.s32.totalorder %s13, 1
      %p30 = por %p28, %p29
      %p31 = scmp.ne.s32.totalorder %s23, %s26
      %p32 = scmp.eq.s32.totalorder %s13, 0
      %p33 = por %p31, %p32
      %p34 = scmp.ne.s32.totalorder %s23, %s26
      %p35 = scmp.eq.s32.totalorder %s18, 1
      %p36 = por %p34, %p35
      %p37 = scmp.ne.s32.totalorder %s26, %s27
      %p38 = scmp.eq.s32.totalorder %s18, 0
      %p39 = por %p37, %p38
      %p40 = scmp.ne.s32.totalorder %s26, %s27
      %p41 = scmp.eq.s32.totalorder %s19, 1
      %p42 = por %p40, %p41
      %p44 = scmp.ne.s32.totalorder %s27, %s43
      %p45 = scmp.eq.s32.totalorder %s19, 0
      %p46 = por %p44, %p45
      %s48 = sadd.s32 %s47, 1
      %p51 = scmp.eq.s32.totalorder %s13, 1
      %p52 = scmp.ne.s32.totalorder %s47, %s49
      %p53 = scmp.eq.s32.totalorder %s13, 0
      %p54 = por %p52, %p53
      %p55 = scmp.ne.s32.totalorder %s47, %s49
      %p56 = scmp.eq.s32.totalorder %s18, 1
      %p57 = por %p55, %p56
      %p58 = scmp.ne.s32.totalorder %s49, %s50
      %p59 = scmp.eq.s32.totalorder %s18, 0
      %p60 = por %p58, %p59
      %p61 = scmp.ne.s32.totalorder %s49, %s50
      %p62 = scmp.eq.s32.totalorder %s19, 1
      %p63 = por %p61, %p62
      %p65 = scmp.ne.s32.totalorder %s50, %s64
      %p66 = scmp.eq.s32.totalorder %s19, 0
      %p67 = por %p65, %p66
      %s69 = sadd.s32 %s68, 1
      %p72 = scmp.eq.s32.totalorder %s13, 1
      %p73 = scmp.ne.s32.totalorder %s68, %s70
      %p74 = scmp.eq.s32.totalorder %s13, 0
      %p75 = por %p73, %p74
      %p76 = scmp.ne.s32.totalorder %s68, %s70
      %p77 = scmp.eq.s32.totalorder %s18, 1
      %p78 = por %p76, %p77
      %p79 = scmp.ne.s32.totalorder %s70, %s71
      %p80 = scmp.eq.s32.totalorder %s18, 0
      %p81 = por %p79, %p80
      %p82 = scmp.ne.s32.totalorder %s70, %s71
      %p83 = scmp.eq.s32.totalorder %s19, 1
      %p84 = por %p82, %p83
      %p86 = scmp.ne.s32.totalorder %s71, %s85
      %p87 = scmp.eq.s32.totalorder %s19, 0
      %p88 = por %p86, %p87
      %s89 = ssub.s32 %s13, %s20
      %p90 = scmp.eq.s32.totalorder %s89, 0
      %s92 = sadd.s32 %s91, 1
      %s93 = scalar_select %p90, %s91, %s92
      %p96 = pneg %p90
      %p97 = scmp.eq.s32.totalorder %s13, 1
      %p98 = por %p96, %p97
      %p99 = scmp.ne.s32.totalorder %s91, %s94
      %p100 = scmp.eq.s32.totalorder %s13, 0
      %p101 = por %p99, %p100
      %p102 = scmp.ne.s32.totalorder %s91, %s94
      %p103 = scmp.eq.s32.totalorder %s18, 1
      %p104 = por %p102, %p103
      %p105 = scmp.ne.s32.totalorder %s94, %s95
      %p106 = scmp.eq.s32.totalorder %s18, 0
      %p107 = por %p105, %p106
      %p108 = scmp.ne.s32.totalorder %s94, %s95
      %p109 = scmp.eq.s32.totalorder %s19, 1
      %p110 = por %p108, %p109
      %p112 = scmp.ne.s32.totalorder %s95, %s111
      %p113 = scmp.eq.s32.totalorder %s19, 0
      %p114 = por %p112, %p113
      %p115 = scmp.le.s32.totalorder 1, %s13
      %p116 = scmp.lt.s32.totalorder %s13, 3
      %p117 = pnand %p115, %p116
      %p118 = pneg %p117
      // Predicated region
      $region9: #{tpu_custom_call.1} parent=5 // pred_check
        _
      $region10: #{tpu_custom_call.1} parent=5 // pred_check_branch
        %120 = sbr.rel (%p117) target = $region12
      $region11: #{tpu_custom_call.1} parent=5 // pred_region
        %s121 = ssub.s32 %s13, 1
        // Predicated region
        $region13: #{tpu_custom_call.1} parent=11 // pred_check
          %p122 = pneg %p60
        $region14: #{tpu_custom_call.1} parent=11 // pred_check_branch
          %124 = sbr.rel (%p122) target = $region16
        $region15: #{tpu_custom_call.1} parent=11 // pred_region
          %s126 = ssub.s32 1152, 1152
          %127 = vsyncadd [#allocation4], %s126
          %s128 = sshll.u32 [#allocation3], 4
          %s129 = int_to_ptr.vmem [resolvable:$true] %s128
          %134 = dma.hbm_to_vmem [thread:$0]  %s1, 1152, %s129, [#allocation4], 64, 64, 4
        $region16: #{tpu_custom_call.1} parent=11 // pred_fallthru
          _
        // Predicated region
        $region17: #{tpu_custom_call.1} parent=11 // pred_check
          %p135 = pneg %p81
        $region18: #{tpu_custom_call.1} parent=11 // pred_check_branch
          %137 = sbr.rel (%p135) target = $region20
        $region19: #{tpu_custom_call.1} parent=11 // pred_region
          _
        $region20: #{tpu_custom_call.1} parent=11 // pred_fallthru
          _
      $region12: #{tpu_custom_call.1} parent=5 // pred_fallthru
        _
      %p138 = scmp.lt.s32.totalorder %s13, 2
      // Predicated region
      $region21: #{tpu_custom_call.1} parent=5 // pred_check
        %p139 = pneg %p138
      $region22: #{tpu_custom_call.1} parent=5 // pred_check_branch
        %141 = sbr.rel (%p139) target = $region24
      $region23: #{tpu_custom_call.1} parent=5 // pred_region
        // Predicated region
        $region25: #{tpu_custom_call.1} parent=23 // pred_check
          %p142 = pneg %p33
        $region26: #{tpu_custom_call.1} parent=23 // pred_check_branch
          %144 = sbr.rel (%p142) target = $region28
        $region27: #{tpu_custom_call.1} parent=23 // pred_region
          %p145 = scmp.lt.s32.totalorder %s13, 1
          %s146 = scalar_select %p145, %s13, 1
          %s147 = smul.addr %s146, 4
          %s148 = scalar_lea.vmem %s0, %s147
        $region28: #{tpu_custom_call.1} parent=23 // pred_fallthru
          _
      $region24: #{tpu_custom_call.1} parent=5 // pred_fallthru
        _
      %p149 = scmp.le.s32.totalorder 1, %s13
      %p150 = scmp.lt.s32.totalorder %s13, 3
      %p151 = pnand %p149, %p150
      %p152 = pneg %p151
      // Predicated region
      $region29: #{tpu_custom_call.1} parent=5 // pred_check
        _
      $region30: #{tpu_custom_call.1} parent=5 // pred_check_branch
        %154 = sbr.rel (%p151) target = $region32
      $region31: #{tpu_custom_call.1} parent=5 // pred_region
        %s155 = ssub.s32 %s13, 1
        // Predicated region
        $region33: #{tpu_custom_call.1} parent=31 // pred_check
          %p156 = pneg %p60
        $region34: #{tpu_custom_call.1} parent=31 // pred_check_branch
          %158 = sbr.rel (%p156) target = $region36
        $region35: #{tpu_custom_call.1} parent=31 // pred_region
          %159 = dma.done [#allocation4], 1152
        $region36: #{tpu_custom_call.1} parent=31 // pred_fallthru
          _
        %p160 = scmp.lt.s32.totalorder %s18, 1
        %s161 = scalar_select %p160, %s18, 1
        %s162 = smul.addr %s161, 4
        %s163 = scalar_lea.vmem %s0, %s162
        %p164 = pneg %p39
        %p165 = pneg %p36
        %p166 = pneg %p60
        %p167 = pneg %p57
        %p168 = pneg %p81
        %p169 = pneg %p78
        %p170 = pneg %p107
        %p171 = pneg %p104
        %s172 = sand.u32 %s94, 1
        %s173 = scalar_lea.sflag [#allocation5], %s172
        %s174 = sand.u32 %s94, 1
        %s175 = smul.addr %s174, 16
        %s176 = scalar_lea.vmem [#allocation6], %s175
        %p177 = scmp.lt.s32.totalorder %s18, 1
        %s178 = scalar_select %p177, %s18, 1
        %s179 = smul.addr %s178, 4
        %s180 = scalar_lea.vmem %s0, %s179
        %v182 = vld [vmem:[%s180] sm:$0xf]
        %v183 = vlaneseq
        %v184 = vand.u32 %v183, 127
        %vm185 = vcmp.lt.s32.totalorder %v184, 0
        %v186 = vsub.s32 0, %v184
        %v187 = vsel %vm185, %v186, %v184
        %v188 = vshrl.u32 %v187, 3
        %v189 = vand.u32 %v187, 7
        %v190 = vsub.s32 0, %v189
        %v191 = vsel %vm185, %v190, %v189
        %vm192 = vcmp.ne.s32.totalorder %v191, 0
        %vm193 = vcmp.lt.s32.totalorder %v191, 0
        %vm194 = vmand %vm193, %vm192
        %v195 = vadd.s32 %v191, 8
        %v196 = vsel %vm194, %v195, %v191
        %vm197 = vcmp.ne.s32.totalorder %v196, 0
        %v198 = vsel %vm197, 1, 0
        %v199 = vcvt.s32.f32 %v198
        %vm200 = vcmp.ne.s32.totalorder %v196, 7
        %v201 = vsel %vm200, 1, 0
        %v202 = vcvt.s32.f32 %v201
        %v203 = vld [vmem:[%s2] sm:$0xff]
        %v204 = vld [vmem:[%s2 + $0x8] sm:$0xff]
        %vm205 = vcmask 1048504
        %206 = vst.msk [vmem:[#allocation2] sm:$0xff] %vm205, 0.0
        %207 = vst.msk [vmem:[#allocation2 + $0x10] sm:$0xff] %vm205, 0.0
        %vm208 = vcmask 597504
        %209 = vst.msk [vmem:[#allocation2 + $0x8] sm:$0xff] %vm208, 0.0
        %210 = vst.msk [vmem:[#allocation2 + $0x18] sm:$0xff] %vm208, 0.0
        %vm211 = vcmask 519168
        %212 = vst.msk [vmem:[#allocation2 + $0x8] sm:$0xf] %vm211, %v182
        %vm213 = vcmask 523268
        %214 = vst.msk [vmem:[#allocation2 + $0x8] sm:$0xf0] %vm213, 0.0
        %vm215 = vcmask 523264
        %216 = vst.msk [vmem:[#allocation2 + $0x18] sm:$0xff] %vm215, 0.0
        %v217 = vld [vmem:[#allocation2] sm:$0xff]
        %v218 = vld [vmem:[#allocation2 + $0x8] sm:$0xff]
        %v219 = vld [vmem:[#allocation2 + $0x10] sm:$0xff]
        %v220 = vld [vmem:[#allocation2 + $0x18] sm:$0xff]
        %222 = vrot.lane.b32.xlu0 %v199, 119
        %v223 = vpop.permute.xlu0 %222
        %v225 = vmul.f32 %v217, %v223
        %v226 = vmul.f32 %v218, %v223
        %v227 = vmul.f32 %v219, %v223
        %v228 = vmul.f32 %v220, %v223
        %v229 = vld [vmem:[#allocation3] sm:$0xf]
        %v230 = vld [vmem:[#allocation3 + $0x4] sm:$0xf]
        %v231 = vpack.c.bf16 %v227, %v225
        %v232 = vpack.c.bf16 %v228, %v226
        %s233 = scalar_lea.vmem [#allocation3], 8
        %v234 = vld [vmem:[%s233] sm:$0xf]
        %v235 = vld [vmem:[%s233 + $0x4] sm:$0xf]
        %v236 = vpack.c.bf16 %v219, %v217
        %v237 = vpack.c.bf16 %v220, %v218
        %v240 = vunpack.c.l.b16 %v234
        %v241 = vunpack.c.l.b16 %v235
        %v242 = vpack.c.b16 %v241, %v240
        %245 = vrot.lane.b32.xlu0 %v236, 8
        %v246 = vpop.permute.xlu0 %245
        %247 = vrot.lane.b32.xlu0 %v237, 8
        %v248 = vpop.permute.xlu0 %247
        %vm249 = vcmask 64512
        %v250 = vsel %vm249, %v246, %v248
        %vm252 = vcmask 130048
        %v254 = vsel %vm252, %v242, 0
        %256 = vmatprep.subr.bf16.mxu0 0
        %257 = vmatpush1.bf16.msra.mxu0 0
        %258 = vmatprep.subr.bf16.mxu0 0
        %259 = vmatpush1.bf16.msra.mxu0 0
        %260 = vmatprep.subr.bf16.mxu0 0
        %261 = vmatpush1.bf16.msra.mxu0 0
        %262 = vmatprep.subr.bf16.mxu0 0
        %263 = vmatpush1.bf16.msra.mxu0 0
        %264 = vmatprep.subr.bf16.mxu0 0
        %265 = vmatpush1.bf16.msra.mxu0 0
        %266 = vmatprep.subr.bf16.mxu0 0
        %267 = vmatpush1.bf16.msra.mxu0 0
        %268 = vmatprep.subr.bf16.mxu0 0
        %269 = vmatpush1.bf16.msra.mxu0 0
        %270 = vmatprep.subr.bf16.mxu0 0
        %271 = vmatpush1.bf16.msra.mxu0 %v250
        %272 = vmatprep.subr.bf16.mxu0 0
        %273 = vmatpush2.bf16.msra.mxu0 0
        %274 = vmatprep.subr.bf16.mxu0 0
        %275 = vmatpush2.bf16.msra.mxu0 0
        %276 = vmatprep.subr.bf16.mxu0 0
        %277 = vmatpush2.bf16.msra.mxu0 0
        %278 = vmatprep.subr.bf16.mxu0 0
        %279 = vmatpush2.bf16.msra.mxu0 0
        %280 = vmatprep.subr.bf16.mxu0 0
        %281 = vmatpush2.bf16.msra.mxu0 0
        %282 = vmatprep.subr.bf16.mxu0 0
        %283 = vmatpush2.bf16.msra.mxu0 0
        %284 = vmatprep.subr.bf16.mxu0 0
        %285 = vmatpush2.bf16.msra.mxu0 0
        %286 = vmatprep.subr.bf16.mxu0 0
        %287 = vmatpush2.bf16.msra.mxu0 0
        %288 = vmatprep.mubr.bf16.mxu0 0
        %289 = vmatmul.mubr.bf16.gmra.mxu0 %v254
        %v290 = vpop.f32.mrf.mxu0
        %v291 = vadd.f32 0.0, %v290
        %v292 = vpop.f32.mrf.mxu0
        %v293 = vpop.f32.mrf.mxu0
        %v294 = vadd.f32 0.0, %v293
        %v295 = vpop.f32.mrf.mxu0
        %296 = vdwg.mxu0
        %v299 = vunpack.c.l.b16 %v229
        %v300 = vunpack.c.l.b16 %v230
        %v301 = vpack.c.b16 %v300, %v299
        %304 = vrot.lane.b32.xlu0 %v231, 9
        %v305 = vpop.permute.xlu0 %304
        %306 = vrot.lane.b32.xlu0 %v232, 9
        %v307 = vpop.permute.xlu0 %306
        %vm308 = vcmask 72704
        %v309 = vsel %vm308, %v305, %v307
        %v312 = vsel %vm252, %v301, 0
        %314 = vmatprep.subr.bf16.mxu0 0
        %315 = vmatpush1.bf16.msra.mxu0 0
        %316 = vmatprep.subr.bf16.mxu0 0
        %317 = vmatpush1.bf16.msra.mxu0 0
        %318 = vmatprep.subr.bf16.mxu0 0
        %319 = vmatpush1.bf16.msra.mxu0 0
        %320 = vmatprep.subr.bf16.mxu0 0
        %321 = vmatpush1.bf16.msra.mxu0 0
        %322 = vmatprep.subr.bf16.mxu0 0
        %323 = vmatpush1.bf16.msra.mxu0 0
        %324 = vmatprep.subr.bf16.mxu0 0
        %325 = vmatpush1.bf16.msra.mxu0 0
        %326 = vmatprep.subr.bf16.mxu0 0
        %327 = vmatpush1.bf16.msra.mxu0 0
        %328 = vmatprep.subr.bf16.mxu0 0
        %329 = vmatpush1.bf16.msra.mxu0 %v309
        %330 = vmatprep.subr.bf16.mxu0 0
        %331 = vmatpush2.bf16.msra.mxu0 0
        %332 = vmatprep.subr.bf16.mxu0 0
        %333 = vmatpush2.bf16.msra.mxu0 0
        %334 = vmatprep.subr.bf16.mxu0 0
        %335 = vmatpush2.bf16.msra.mxu0 0
        %336 = vmatprep.subr.bf16.mxu0 0
        %337 = vmatpush2.bf16.msra.mxu0 0
        %338 = vmatprep.subr.bf16.mxu0 0
        %339 = vmatpush2.bf16.msra.mxu0 0
        %340 = vmatprep.subr.bf16.mxu0 0
        %341 = vmatpush2.bf16.msra.mxu0 0
        %342 = vmatprep.subr.bf16.mxu0 0
        %343 = vmatpush2.bf16.msra.mxu0 0
        %344 = vmatprep.subr.bf16.mxu0 0
        %345 = vmatpush2.bf16.msra.mxu0 0
        %346 = vmatprep.mubr.bf16.mxu0 0
        %347 = vmatmul.mubr.bf16.gmra.mxu0 %v312
        %v348 = vpop.f32.mrf.mxu0
        %v349 = vadd.f32 %v291, %v348
        %v350 = vpop.f32.mrf.mxu0
        %v351 = vpop.f32.mrf.mxu0
        %v352 = vadd.f32 %v294, %v351
        %v353 = vpop.f32.mrf.mxu0
        %354 = vdwg.mxu0
        %356 = vrot.lane.b32.xlu0 %v202, 121
        %v357 = vpop.permute.xlu0 %356
        %v359 = vmul.f32 %v217, %v357
        %v360 = vmul.f32 %v218, %v357
        %v361 = vmul.f32 %v219, %v357
        %v362 = vmul.f32 %v220, %v357
        %s363 = scalar_lea.vmem [#allocation3], 16
        %v364 = vld [vmem:[%s363] sm:$0xf]
        %v365 = vld [vmem:[%s363 + $0x4] sm:$0xf]
        %v366 = vpack.c.bf16 %v361, %v359
        %v367 = vpack.c.bf16 %v362, %v360
        %v370 = vunpack.c.l.b16 %v364
        %v371 = vunpack.c.l.b16 %v365
        %v372 = vpack.c.b16 %v371, %v370
        %375 = vrot.lane.b32.xlu0 %v366, 7
        %v376 = vpop.permute.xlu0 %375
        %377 = vrot.lane.b32.xlu0 %v367, 7
        %v378 = vpop.permute.xlu0 %377
        %vm379 = vcmask 56320
        %v380 = vsel %vm379, %v376, %v378
        %v383 = vsel %vm252, %v372, 0
        %385 = vmatprep.subr.bf16.mxu0 0
        %386 = vmatpush1.bf16.msra.mxu0 0
        %387 = vmatprep.subr.bf16.mxu0 0
        %388 = vmatpush1.bf16.msra.mxu0 0
        %389 = vmatprep.subr.bf16.mxu0 0
        %390 = vmatpush1.bf16.msra.mxu0 0
        %391 = vmatprep.subr.bf16.mxu0 0
        %392 = vmatpush1.bf16.msra.mxu0 0
        %393 = vmatprep.subr.bf16.mxu0 0
        %394 = vmatpush1.bf16.msra.mxu0 0
        %395 = vmatprep.subr.bf16.mxu0 0
        %396 = vmatpush1.bf16.msra.mxu0 0
        %397 = vmatprep.subr.bf16.mxu0 0
        %398 = vmatpush1.bf16.msra.mxu0 0
        %399 = vmatprep.subr.bf16.mxu0 0
        %400 = vmatpush1.bf16.msra.mxu0 %v380
        %401 = vmatprep.subr.bf16.mxu0 0
        %402 = vmatpush2.bf16.msra.mxu0 0
        %403 = vmatprep.subr.bf16.mxu0 0
        %404 = vmatpush2.bf16.msra.mxu0 0
        %405 = vmatprep.subr.bf16.mxu0 0
        %406 = vmatpush2.bf16.msra.mxu0 0
        %407 = vmatprep.subr.bf16.mxu0 0
        %408 = vmatpush2.bf16.msra.mxu0 0
        %409 = vmatprep.subr.bf16.mxu0 0
        %410 = vmatpush2.bf16.msra.mxu0 0
        %411 = vmatprep.subr.bf16.mxu0 0
        %412 = vmatpush2.bf16.msra.mxu0 0
        %413 = vmatprep.subr.bf16.mxu0 0
        %414 = vmatpush2.bf16.msra.mxu0 0
        %415 = vmatprep.subr.bf16.mxu0 0
        %416 = vmatpush2.bf16.msra.mxu0 0
        %417 = vmatprep.mubr.bf16.mxu0 0
        %418 = vmatmul.mubr.bf16.gmra.mxu0 %v383
        %v419 = vpop.f32.mrf.mxu0
        %v420 = vadd.f32 0.0, %v419
        %v421 = vpop.f32.mrf.mxu0
        %v422 = vpop.f32.mrf.mxu0
        %v423 = vadd.f32 0.0, %v422
        %v424 = vpop.f32.mrf.mxu0
        %425 = vdwg.mxu0
        %v426 = vadd.f32 %v349, %v420
        %v427 = vadd.f32 %v352, %v423
        %428 = vrot.lane.b32.xlu0 %v199, 127
        %v429 = vpop.permute.xlu0 %428
        %v431 = vmul.f32 %v217, %v429
        %v432 = vmul.f32 %v218, %v429
        %v433 = vmul.f32 %v219, %v429
        %v434 = vmul.f32 %v220, %v429
        %s435 = scalar_lea.vmem [#allocation3], 24
        %v436 = vld [vmem:[%s435] sm:$0xf]
        %v437 = vld [vmem:[%s435 + $0x4] sm:$0xf]
        %v438 = vpack.c.bf16 %v433, %v431
        %v439 = vpack.c.bf16 %v434, %v432
        %v442 = vunpack.c.l.b16 %v436
        %v443 = vunpack.c.l.b16 %v437
        %v444 = vpack.c.b16 %v443, %v442
        %447 = vrot.lane.b32.xlu0 %v438, 1
        %v448 = vpop.permute.xlu0 %447
        %449 = vrot.lane.b32.xlu0 %v439, 1
        %v450 = vpop.permute.xlu0 %449
        %vm451 = vcmask 7168
        %v452 = vsel %vm451, %v448, %v450
        %v455 = vsel %vm252, %v444, 0
        %457 = vmatprep.subr.bf16.mxu0 0
        %458 = vmatpush1.bf16.msra.mxu0 0
        %459 = vmatprep.subr.bf16.mxu0 0
        %460 = vmatpush1.bf16.msra.mxu0 0
        %461 = vmatprep.subr.bf16.mxu0 0
        %462 = vmatpush1.bf16.msra.mxu0 0
        %463 = vmatprep.subr.bf16.mxu0 0
        %464 = vmatpush1.bf16.msra.mxu0 0
        %465 = vmatprep.subr.bf16.mxu0 0
        %466 = vmatpush1.bf16.msra.mxu0 0
        %467 = vmatprep.subr.bf16.mxu0 0
        %468 = vmatpush1.bf16.msra.mxu0 0
        %469 = vmatprep.subr.bf16.mxu0 0
        %470 = vmatpush1.bf16.msra.mxu0 0
        %471 = vmatprep.subr.bf16.mxu0 0
        %472 = vmatpush1.bf16.msra.mxu0 %v452
        %473 = vmatprep.subr.bf16.mxu0 0
        %474 = vmatpush2.bf16.msra.mxu0 0
        %475 = vmatprep.subr.bf16.mxu0 0
        %476 = vmatpush2.bf16.msra.mxu0 0
        %477 = vmatprep.subr.bf16.mxu0 0
        %478 = vmatpush2.bf16.msra.mxu0 0
        %479 = vmatprep.subr.bf16.mxu0 0
        %480 = vmatpush2.bf16.msra.mxu0 0
        %481 = vmatprep.subr.bf16.mxu0 0
        %482 = vmatpush2.bf16.msra.mxu0 0
        %483 = vmatprep.subr.bf16.mxu0 0
        %484 = vmatpush2.bf16.msra.mxu0 0
        %485 = vmatprep.subr.bf16.mxu0 0
        %486 = vmatpush2.bf16.msra.mxu0 0
        %487 = vmatprep.subr.bf16.mxu0 0
        %488 = vmatpush2.bf16.msra.mxu0 0
        %489 = vmatprep.mubr.bf16.mxu0 0
        %490 = vmatmul.mubr.bf16.gmra.mxu0 %v455
        %v491 = vpop.f32.mrf.mxu0
        %v492 = vadd.f32 0.0, %v491
        %v493 = vpop.f32.mrf.mxu0
        %v494 = vpop.f32.mrf.mxu0
        %v495 = vadd.f32 0.0, %v494
        %v496 = vpop.f32.mrf.mxu0
        %497 = vdwg.mxu0
        %v498 = vadd.f32 %v426, %v492
        %v499 = vadd.f32 %v427, %v495
        %s500 = scalar_lea.vmem [#allocation3], 32
        %v501 = vld [vmem:[%s500] sm:$0xf]
        %v502 = vld [vmem:[%s500 + $0x4] sm:$0xf]
        %v505 = vunpack.c.l.b16 %v501
        %v506 = vunpack.c.l.b16 %v502
        %v507 = vpack.c.b16 %v506, %v505
        %v509 = vsel %vm252, %v507, 0
        %511 = vmatprep.subr.bf16.mxu0 0
        %512 = vmatpush1.bf16.msra.mxu0 0
        %513 = vmatprep.subr.bf16.mxu0 0
        %514 = vmatpush1.bf16.msra.mxu0 0
        %515 = vmatprep.subr.bf16.mxu0 0
        %516 = vmatpush1.bf16.msra.mxu0 0
        %517 = vmatprep.subr.bf16.mxu0 0
        %518 = vmatpush1.bf16.msra.mxu0 0
        %519 = vmatprep.subr.bf16.mxu0 0
        %520 = vmatpush1.bf16.msra.mxu0 0
        %521 = vmatprep.subr.bf16.mxu0 0
        %522 = vmatpush1.bf16.msra.mxu0 0
        %523 = vmatprep.subr.bf16.mxu0 0
        %524 = vmatpush1.bf16.msra.mxu0 0
        %525 = vmatprep.subr.bf16.mxu0 0
        %526 = vmatpush1.bf16.msra.mxu0 %v237
        %527 = vmatprep.subr.bf16.mxu0 0
        %528 = vmatpush2.bf16.msra.mxu0 0
        %529 = vmatprep.subr.bf16.mxu0 0
        %530 = vmatpush2.bf16.msra.mxu0 0
        %531 = vmatprep.subr.bf16.mxu0 0
        %532 = vmatpush2.bf16.msra.mxu0 0
        %533 = vmatprep.subr.bf16.mxu0 0
        %534 = vmatpush2.bf16.msra.mxu0 0
        %535 = vmatprep.subr.bf16.mxu0 0
        %536 = vmatpush2.bf16.msra.mxu0 0
        %537 = vmatprep.subr.bf16.mxu0 0
        %538 = vmatpush2.bf16.msra.mxu0 0
        %539 = vmatprep.subr.bf16.mxu0 0
        %540 = vmatpush2.bf16.msra.mxu0 0
        %541 = vmatprep.subr.bf16.mxu0 0
        %542 = vmatpush2.bf16.msra.mxu0 0
        %543 = vmatprep.mubr.bf16.mxu0 0
        %544 = vmatmul.mubr.bf16.gmra.mxu0 %v509
        %v545 = vpop.f32.mrf.mxu0
        %v546 = vadd.f32 0.0, %v545
        %v547 = vpop.f32.mrf.mxu0
        %v548 = vpop.f32.mrf.mxu0
        %v549 = vadd.f32 0.0, %v548
        %v550 = vpop.f32.mrf.mxu0
        %551 = vdwg.mxu0
        %v552 = vadd.f32 %v498, %v546
        %v553 = vadd.f32 %v499, %v549
        %554 = vrot.lane.b32.xlu0 %v202, 1
        %v555 = vpop.permute.xlu0 %554
        %v557 = vmul.f32 %v218, %v555
        %v558 = vmul.f32 %v220, %v555
        %s559 = scalar_lea.vmem [#allocation3], 40
        %v560 = vld [vmem:[%s559] sm:$0xf]
        %v561 = vld [vmem:[%s559 + $0x4] sm:$0xf]
        %v562 = vpack.c.bf16 %v558, %v557
        %v565 = vunpack.c.l.b16 %v560
        %v566 = vunpack.c.l.b16 %v561
        %v567 = vpack.c.b16 %v566, %v565
        %569 = vrot.lane.b32.xlu0 %v562, 127
        %v570 = vpop.permute.xlu0 %569
        %v573 = vsel %vm252, %v567, 0
        %575 = vmatprep.subr.bf16.mxu0 0
        %576 = vmatpush1.bf16.msra.mxu0 0
        %577 = vmatprep.subr.bf16.mxu0 0
        %578 = vmatpush1.bf16.msra.mxu0 0
        %579 = vmatprep.subr.bf16.mxu0 0
        %580 = vmatpush1.bf16.msra.mxu0 0
        %581 = vmatprep.subr.bf16.mxu0 0
        %582 = vmatpush1.bf16.msra.mxu0 0
        %583 = vmatprep.subr.bf16.mxu0 0
        %584 = vmatpush1.bf16.msra.mxu0 0
        %585 = vmatprep.subr.bf16.mxu0 0
        %586 = vmatpush1.bf16.msra.mxu0 0
        %587 = vmatprep.subr.bf16.mxu0 0
        %588 = vmatpush1.bf16.msra.mxu0 0
        %589 = vmatprep.subr.bf16.mxu0 0
        %590 = vmatpush1.bf16.msra.mxu0 %v570
        %591 = vmatprep.subr.bf16.mxu0 0
        %592 = vmatpush2.bf16.msra.mxu0 0
        %593 = vmatprep.subr.bf16.mxu0 0
        %594 = vmatpush2.bf16.msra.mxu0 0
        %595 = vmatprep.subr.bf16.mxu0 0
        %596 = vmatpush2.bf16.msra.mxu0 0
        %597 = vmatprep.subr.bf16.mxu0 0
        %598 = vmatpush2.bf16.msra.mxu0 0
        %599 = vmatprep.subr.bf16.mxu0 0
        %600 = vmatpush2.bf16.msra.mxu0 0
        %601 = vmatprep.subr.bf16.mxu0 0
        %602 = vmatpush2.bf16.msra.mxu0 0
        %603 = vmatprep.subr.bf16.mxu0 0
        %604 = vmatpush2.bf16.msra.mxu0 0
        %605 = vmatprep.subr.bf16.mxu0 0
        %606 = vmatpush2.bf16.msra.mxu0 0
        %607 = vmatprep.mubr.bf16.mxu0 0
        %608 = vmatmul.mubr.bf16.gmra.mxu0 %v573
        %v609 = vpop.f32.mrf.mxu0
        %v610 = vadd.f32 0.0, %v609
        %v611 = vpop.f32.mrf.mxu0
        %v612 = vpop.f32.mrf.mxu0
        %v613 = vadd.f32 0.0, %v612
        %v614 = vpop.f32.mrf.mxu0
        %615 = vdwg.mxu0
        %v616 = vadd.f32 %v552, %v610
        %v617 = vadd.f32 %v553, %v613
        %618 = vrot.lane.b32.xlu0 %v199, 7
        %v619 = vpop.permute.xlu0 %618
        %v621 = vmul.f32 %v218, %v619
        %v622 = vmul.f32 %v220, %v619
        %s623 = scalar_lea.vmem [#allocation3], 48
        %v624 = vld [vmem:[%s623] sm:$0xf]
        %v625 = vld [vmem:[%s623 + $0x4] sm:$0xf]
        %v626 = vpack.c.bf16 %v622, %v621
        %v629 = vunpack.c.l.b16 %v624
        %v630 = vunpack.c.l.b16 %v625
        %v631 = vpack.c.b16 %v630, %v629
        %633 = vrot.lane.b32.xlu0 %v626, 121
        %v634 = vpop.permute.xlu0 %633
        %v637 = vsel %vm252, %v631, 0
        %639 = vmatprep.subr.bf16.mxu0 0
        %640 = vmatpush1.bf16.msra.mxu0 0
        %641 = vmatprep.subr.bf16.mxu0 0
        %642 = vmatpush1.bf16.msra.mxu0 0
        %643 = vmatprep.subr.bf16.mxu0 0
        %644 = vmatpush1.bf16.msra.mxu0 0
        %645 = vmatprep.subr.bf16.mxu0 0
        %646 = vmatpush1.bf16.msra.mxu0 0
        %647 = vmatprep.subr.bf16.mxu0 0
        %648 = vmatpush1.bf16.msra.mxu0 0
        %649 = vmatprep.subr.bf16.mxu0 0
        %650 = vmatpush1.bf16.msra.mxu0 0
        %651 = vmatprep.subr.bf16.mxu0 0
        %652 = vmatpush1.bf16.msra.mxu0 0
        %653 = vmatprep.subr.bf16.mxu0 0
        %654 = vmatpush1.bf16.msra.mxu0 %v634
        %655 = vmatprep.subr.bf16.mxu0 0
        %656 = vmatpush2.bf16.msra.mxu0 0
        %657 = vmatprep.subr.bf16.mxu0 0
        %658 = vmatpush2.bf16.msra.mxu0 0
        %659 = vmatprep.subr.bf16.mxu0 0
        %660 = vmatpush2.bf16.msra.mxu0 0
        %661 = vmatprep.subr.bf16.mxu0 0
        %662 = vmatpush2.bf16.msra.mxu0 0
        %663 = vmatprep.subr.bf16.mxu0 0
        %664 = vmatpush2.bf16.msra.mxu0 0
        %665 = vmatprep.subr.bf16.mxu0 0
        %666 = vmatpush2.bf16.msra.mxu0 0
        %667 = vmatprep.subr.bf16.mxu0 0
        %668 = vmatpush2.bf16.msra.mxu0 0
        %669 = vmatprep.subr.bf16.mxu0 0
        %670 = vmatpush2.bf16.msra.mxu0 0
        %671 = vmatprep.mubr.bf16.mxu0 0
        %672 = vmatmul.mubr.bf16.gmra.mxu0 %v637
        %v673 = vpop.f32.mrf.mxu0
        %v674 = vadd.f32 0.0, %v673
        %v675 = vpop.f32.mrf.mxu0
        %v676 = vpop.f32.mrf.mxu0
        %v677 = vadd.f32 0.0, %v676
        %v678 = vpop.f32.mrf.mxu0
        %679 = vdwg.mxu0
        %v680 = vadd.f32 %v616, %v674
        %v681 = vadd.f32 %v617, %v677
        %s682 = scalar_lea.vmem [#allocation3], 56
        %v683 = vld [vmem:[%s682] sm:$0xf]
        %v684 = vld [vmem:[%s682 + $0x4] sm:$0xf]
        %v687 = vunpack.c.l.b16 %v683
        %v688 = vunpack.c.l.b16 %v684
        %v689 = vpack.c.b16 %v688, %v687
        %690 = vrot.lane.b32.xlu0 %v237, 120
        %v691 = vpop.permute.xlu0 %690
        %v694 = vsel %vm252, %v689, 0
        %696 = vmatprep.subr.bf16.mxu0 0
        %697 = vmatpush1.bf16.msra.mxu0 0
        %698 = vmatprep.subr.bf16.mxu0 0
        %699 = vmatpush1.bf16.msra.mxu0 0
        %700 = vmatprep.subr.bf16.mxu0 0
        %701 = vmatpush1.bf16.msra.mxu0 0
        %702 = vmatprep.subr.bf16.mxu0 0
        %703 = vmatpush1.bf16.msra.mxu0 0
        %704 = vmatprep.subr.bf16.mxu0 0
        %705 = vmatpush1.bf16.msra.mxu0 0
        %706 = vmatprep.subr.bf16.mxu0 0
        %707 = vmatpush1.bf16.msra.mxu0 0
        %708 = vmatprep.subr.bf16.mxu0 0
        %709 = vmatpush1.bf16.msra.mxu0 0
        %710 = vmatprep.subr.bf16.mxu0 0
        %711 = vmatpush1.bf16.msra.mxu0 %v691
        %712 = vmatprep.subr.bf16.mxu0 0
        %713 = vmatpush2.bf16.msra.mxu0 0
        %714 = vmatprep.subr.bf16.mxu0 0
        %715 = vmatpush2.bf16.msra.mxu0 0
        %716 = vmatprep.subr.bf16.mxu0 0
        %717 = vmatpush2.bf16.msra.mxu0 0
        %718 = vmatprep.subr.bf16.mxu0 0
        %719 = vmatpush2.bf16.msra.mxu0 0
        %720 = vmatprep.subr.bf16.mxu0 0
        %721 = vmatpush2.bf16.msra.mxu0 0
        %722 = vmatprep.subr.bf16.mxu0 0
        %723 = vmatpush2.bf16.msra.mxu0 0
        %724 = vmatprep.subr.bf16.mxu0 0
        %725 = vmatpush2.bf16.msra.mxu0 0
        %726 = vmatprep.subr.bf16.mxu0 0
        %727 = vmatpush2.bf16.msra.mxu0 0
        %728 = vmatprep.mubr.bf16.mxu0 0
        %729 = vmatmul.mubr.bf16.gmra.mxu0 %v694
        %v730 = vpop.f32.mrf.mxu0
        %v731 = vadd.f32 0.0, %v730
        %v732 = vpop.f32.mrf.mxu0
        %v733 = vpop.f32.mrf.mxu0
        %v734 = vadd.f32 0.0, %v733
        %v735 = vpop.f32.mrf.mxu0
        %736 = vdwg.mxu0
        %v737 = vadd.f32 %v680, %v731
        %v738 = vadd.f32 %v681, %v734
        %739 = vrot.lane.b32.xlu0 %v202, 9
        %v740 = vpop.permute.xlu0 %739
        %v742 = vmul.f32 %v218, %v740
        %v743 = vmul.f32 %v220, %v740
        %s744 = scalar_lea.vmem [#allocation3], 64
        %v745 = vld [vmem:[%s744] sm:$0xf]
        %v746 = vld [vmem:[%s744 + $0x4] sm:$0xf]
        %v747 = vpack.c.bf16 %v743, %v742
        %v750 = vunpack.c.l.b16 %v745
        %v751 = vunpack.c.l.b16 %v746
        %v752 = vpack.c.b16 %v751, %v750
        %754 = vrot.lane.b32.xlu0 %v747, 119
        %v755 = vpop.permute.xlu0 %754
        %v758 = vsel %vm252, %v752, 0
        %760 = vmatprep.subr.bf16.mxu0 0
        %761 = vmatpush1.bf16.msra.mxu0 0
        %762 = vmatprep.subr.bf16.mxu0 0
        %763 = vmatpush1.bf16.msra.mxu0 0
        %764 = vmatprep.subr.bf16.mxu0 0
        %765 = vmatpush1.bf16.msra.mxu0 0
        %766 = vmatprep.subr.bf16.mxu0 0
        %767 = vmatpush1.bf16.msra.mxu0 0
        %768 = vmatprep.subr.bf16.mxu0 0
        %769 = vmatpush1.bf16.msra.mxu0 0
        %770 = vmatprep.subr.bf16.mxu0 0
        %771 = vmatpush1.bf16.msra.mxu0 0
        %772 = vmatprep.subr.bf16.mxu0 0
        %773 = vmatpush1.bf16.msra.mxu0 0
        %774 = vmatprep.subr.bf16.mxu0 0
        %775 = vmatpush1.bf16.msra.mxu0 %v755
        %776 = vmatprep.subr.bf16.mxu0 0
        %777 = vmatpush2.bf16.msra.mxu0 0
        %778 = vmatprep.subr.bf16.mxu0 0
        %779 = vmatpush2.bf16.msra.mxu0 0
        %780 = vmatprep.subr.bf16.mxu0 0
        %781 = vmatpush2.bf16.msra.mxu0 0
        %782 = vmatprep.subr.bf16.mxu0 0
        %783 = vmatpush2.bf16.msra.mxu0 0
        %784 = vmatprep.subr.bf16.mxu0 0
        %785 = vmatpush2.bf16.msra.mxu0 0
        %786 = vmatprep.subr.bf16.mxu0 0
        %787 = vmatpush2.bf16.msra.mxu0 0
        %788 = vmatprep.subr.bf16.mxu0 0
        %789 = vmatpush2.bf16.msra.mxu0 0
        %790 = vmatprep.subr.bf16.mxu0 0
        %791 = vmatpush2.bf16.msra.mxu0 0
        %792 = vmatprep.mubr.bf16.mxu0 0
        %793 = vmatmul.mubr.bf16.gmra.mxu0 %v758
        %v794 = vpop.f32.mrf.mxu0
        %v795 = vadd.f32 0.0, %v794
        %v796 = vpop.f32.mrf.mxu0
        %v797 = vpop.f32.mrf.mxu0
        %v798 = vadd.f32 0.0, %v797
        %v799 = vpop.f32.mrf.mxu0
        %800 = vdwg.mxu0
        %v801 = vadd.f32 %v737, %v795
        %v802 = vadd.f32 %v738, %v798
        %804 = vset.pattern.permute.xlu0 0
        %805 = vperm.xlu0 %804, %v203
        %v806 = vpop.permute.xlu0 %805
        %809 = vset.pattern.permute.xlu0 0
        %810 = vperm.xlu0 %809, %v204
        %v811 = vpop.permute.xlu0 %810
        %v813 = vadd.f32 %v801, %v806
        %v814 = vadd.f32 %v802, %v811
        %815 = vst.msk [vmem:[%s176] sm:$0xff] %vm215, %v813
        %816 = vst.msk [vmem:[%s176 + $0x8] sm:$0xff] %vm215, %v814
        %s817 = sand.u32 %s94, 1
        %s818 = scalar_lea.sflag [#allocation5], %s817
        %s819 = sand.u32 %s94, 1
        %s820 = smul.addr %s819, 16
        %s821 = scalar_lea.vmem [#allocation6], %s820
        // Predicated region
        $region37: #{tpu_custom_call.1} parent=31 // pred_check
          %p822 = pneg %p104
        $region38: #{tpu_custom_call.1} parent=31 // pred_check_branch
          %824 = sbr.rel (%p822) target = $region40
        $region39: #{tpu_custom_call.1} parent=31 // pred_region
          %s826 = ssub.s32 256, 256
          %827 = vsyncadd %s818, %s826
          %s828 = smul.addr %s18, 2
          %s829 = smul.addr %s828, 128
          %s830 = scalar_lea.hbm %s3, %s829
          %s831 = sshll.u32 %s821, 4
          %s832 = int_to_ptr.vmem [resolvable:$true] %s831
          %837 = dma.vmem_to_hbm [thread:$0]  %s832, 256, %s830, %s818, 128, 128, 8
        $region40: #{tpu_custom_call.1} parent=31 // pred_fallthru
          _
      $region32: #{tpu_custom_call.1} parent=5 // pred_fallthru
        _
      %p838 = scmp.le.s32.totalorder 2, %s13
      // Predicated region
      $region41: #{tpu_custom_call.1} parent=5 // pred_check
        %p839 = pneg %p838
      $region42: #{tpu_custom_call.1} parent=5 // pred_check_branch
        %841 = sbr.rel (%p839) target = $region44
      $region43: #{tpu_custom_call.1} parent=5 // pred_region
        %s842 = ssub.s32 %s13, 2
        // Predicated region
        $region45: #{tpu_custom_call.1} parent=43 // pred_check
          %p843 = pneg %p110
        $region46: #{tpu_custom_call.1} parent=43 // pred_check_branch
          %845 = sbr.rel (%p843) target = $region48
        $region47: #{tpu_custom_call.1} parent=43 // pred_region
          %s846 = sand.u32 %s95, 1
          %s847 = scalar_lea.sflag [#allocation5], %s846
          %s848 = sand.u32 %s95, 1
          %s849 = smul.addr %s848, 16
          %s850 = scalar_lea.vmem [#allocation6], %s849
          %851 = dma.done %s847, 256
        $region48: #{tpu_custom_call.1} parent=43 // pred_fallthru
          _
      $region44: #{tpu_custom_call.1} parent=5 // pred_fallthru
        _
    $region6: #{tpu_custom_call.1} parent=1 // loop_footer
      %s17 = sadd.s32 1, %s13
    $region7: #{tpu_custom_call.1} parent=1 // loop_footer_branch
      %12 = sbr.rel target = $region3
    $region8: #{tpu_custom_call.1} parent=1 // loop_exit
      _
    %852 = vsyncpa [#allocation4], 1
    %s853 = scalar_lea.sflag [#allocation4], 1
    %854 = vsyncpa %s853, 1
    %855 = vsyncpa [#allocation5], 1
    %s856 = scalar_lea.sflag [#allocation5], 1
    %857 = vsyncpa %s856, 1

</llo_original>
